<compile_context>
chip_gen: v7x
topology: tpu7x:2x2x1
jax: 0.10.0
libtpu: 0.0.40
codegen_flags: <defaults>
</compile_context>

<pallas_src>
import jax
import jax.numpy as jnp
from jax.experimental import pallas as pl
from jax.experimental.pallas import tpu as pltpu


EMBED_DIM = 8
H1 = 64
H2 = 32


def neumf_mlp_kernel(x_ref, w1_ref, w2_ref, pk_ref, o_ref):
    """One batch tile of the NeuMF MLP, batch on the lane axis.

    x_ref  : (2E, tb)  concatenated user/item embeddings (transposed), bf16/f32
    w1_ref : (H1, 2E)  layer-1 weight (PyTorch (out, in) layout)
    w2_ref : (H2, H1)
    pk_ref : (H1, 3)   f32 packed small params:
                        col 0          = b1
                        col 1 [0:H2]   = b2
                        col 1 [H2:2H2] = w3 (as a column)
                        col 2 [0, :]   = b3 (scalar at [0, 2])
    o_ref  : (1, tb)   lane-dense sigmoid output, f32
    """
    h1_dim = w1_ref.shape[0]
    h2_dim = w2_ref.shape[0]
    del h1_dim  # (documentation only)

    b1 = pk_ref[:, 0:1]                      # (H1, 1)
    b2 = pk_ref[:h2_dim, 1:2]                # (H2, 1)
    w3 = pk_ref[h2_dim:2 * h2_dim, 1:2]      # (H2, 1)
    b3 = pk_ref[0:1, 2:3]                    # (1, 1)

    # Layer 1 (fused over the user/item concat axis): f32 MXU accumulation.
    h1 = jnp.dot(w1_ref[...], x_ref[...], preferred_element_type=jnp.float32)
    h1 = jnp.maximum(h1 + b1, 0.0)                           # f32 (H1, tb)
    h1 = h1.astype(w2_ref.dtype)                             # bf16 operand for layer 2

    h2 = jnp.dot(w2_ref[...], h1, preferred_element_type=jnp.float32)
    h2 = jnp.maximum(h2 + b2, 0.0)                           # f32 (H2, tb)

    # Linear(32 -> 1): VPU multiply + sublane reduce (a 1-column MXU matmul
    # would waste the systolic array); result is already lane-dense (1, tb).
    logit = jnp.sum(h2 * w3, axis=0, keepdims=True) + b3
    o_ref[...] = jax.nn.sigmoid(logit)


def _tile_batch(batch, tb):
    """Pick a lane-aligned batch tile and padded batch size.

    Keeps tb a multiple of 128, and caps it at b_aligned // 2 (128-aligned) so
    the 'parallel' grid has >= 2 steps whenever the batch allows it (v7x has 2
    TensorCores; a 1-step grid would idle half the chip).  Harmless on v5e/v6e.
    """
    b_aligned = pl.cdiv(batch, 128) * 128
    if b_aligned >= 256:
        tb = min(tb, max(128, (b_aligned // 2) // 128 * 128))
    else:
        tb = 128
    b_pad = pl.cdiv(batch, tb) * tb
    return tb, b_pad


def neumf_mlp_pallas(x_t, w1, w2, packed, *, tb):
    """x_t: (2E, b_pad), already padded; returns sigmoid(MLP) as (1, b_pad)."""
    din, b_pad = x_t.shape
    assert b_pad % tb == 0 and tb % 128 == 0

    full = lambda a: pl.BlockSpec(a.shape, lambda i: (0, 0))  # resident weights

    return pl.pallas_call(
        neumf_mlp_kernel,
        out_shape=jax.ShapeDtypeStruct((1, b_pad), jnp.float32),
        grid=(b_pad // tb,),
        in_specs=[
            pl.BlockSpec((din, tb), lambda i: (0, i)),        # streamed input tile
            full(w1), full(w2), full(packed),                 # resident params
        ],
        out_specs=pl.BlockSpec((1, tb), lambda i: (0, i)),    # lane-dense output
        compiler_params=pltpu.CompilerParams(
            dimension_semantics=("parallel",)),
    )(x_t, w1, w2, packed)


def prepare_params(params, compute_dtype=jnp.bfloat16):
    """One-time (outside the per-call path) conversion to kernel-ready layout.

    * Embedding tables transposed to (E, N) so the per-call gather yields the
      (E, B) layout directly (no runtime transpose HBM pass).
    * Matmul operands cast to `compute_dtype` (bf16 by default: halves HBM/DMA
      traffic; MXU accumulation stays f32 inside the kernel).
    * b1, b2, w3, b3 packed into a single small (H1, 3) f32 resident array.
    """
    h1 = params["w1"].shape[0]
    h2 = params["w2"].shape[0]
    packed = jnp.zeros((h1, 3), jnp.float32)
    packed = packed.at[:, 0].set(params["b1"])
    packed = packed.at[:h2, 1].set(params["b2"])
    packed = packed.at[h2:2 * h2, 1].set(params["w3"][0])
    packed = packed.at[0, 2].set(params["b3"][0])
    return {
        "user_embedding_t": params["user_embedding"].T.astype(compute_dtype),
        "item_embedding_t": params["item_embedding"].T.astype(compute_dtype),
        "w1": params["w1"].astype(compute_dtype),   # (H1, 2E)
        "w2": params["w2"].astype(compute_dtype),   # (H2, H1)
        "packed": packed,                           # (H1, 3) f32
    }


def neumf_forward(prepared, user_ids, item_ids, *, tb=4096):
    """Forward pass.  `prepared` comes from prepare_params()."""
    batch = user_ids.shape[0]
    tb, b_pad = _tile_batch(batch, tb)

    # Pad the cheap int32 ids (not the f32 activations) so the gather already
    # emits padded (E, b_pad) outputs.  Index 0 is always valid.
    if b_pad != batch:
        user_ids = jnp.pad(user_ids, (0, b_pad - batch))
        item_ids = jnp.pad(item_ids, (0, b_pad - batch))

    # Data-dependent embedding gathers stay as XLA glue (column gather on the
    # pre-transposed tables).  NOTE: jnp.take clamps out-of-range ids silently,
    # whereas PyTorch nn.Embedding would raise.
    u_t = jnp.take(prepared["user_embedding_t"], user_ids, axis=1)  # (E, b_pad)
    i_t = jnp.take(prepared["item_embedding_t"], item_ids, axis=1)  # (E, b_pad)
    x_t = jnp.concatenate([u_t, i_t], axis=0)                       # (2E, b_pad)

    out = neumf_mlp_pallas(x_t, prepared["w1"], prepared["w2"],
                           prepared["packed"], tb=tb)
    # Padded tail columns hold sigmoid(bias-only) garbage from the id padding;
    # they are sliced off here and must never be read.
    # Matches PyTorch .squeeze(): (B, 1) -> (B,)  (scalar if B == 1).
    return jnp.squeeze(out[0, :batch])


def init_params(key, num_users, num_items, embedding_dim=EMBED_DIM):
    """Parameters in PyTorch layouts: Linear weight (out, in), bias (out,)."""
    ks = jax.random.split(key, 8)

    def uniform(k, shape, bound):
        return jax.random.uniform(k, shape, jnp.float32, -bound, bound)

    din = embedding_dim * 2
    return {
        # nn.Embedding default init: N(0, 1)
        "user_embedding": jax.random.normal(ks[0], (num_users, embedding_dim),
                                            jnp.float32),
        "item_embedding": jax.random.normal(ks[1], (num_items, embedding_dim),
                                            jnp.float32),
        # nn.Linear default init: U(-1/sqrt(fan_in), 1/sqrt(fan_in))
        "w1": uniform(ks[2], (H1, din), 1.0 / jnp.sqrt(din)),
        "b1": uniform(ks[3], (H1,), 1.0 / jnp.sqrt(din)),
        "w2": uniform(ks[4], (H2, H1), 1.0 / jnp.sqrt(H1)),
        "b2": uniform(ks[5], (H2,), 1.0 / jnp.sqrt(H1)),
        "w3": uniform(ks[6], (1, H2), 1.0 / jnp.sqrt(H2)),
        "b3": uniform(ks[7], (1,), 1.0 / jnp.sqrt(H2)),
    }


def neumf_ref(params, user_ids, item_ids):
    """Pure-JAX reference (PyTorch semantics) for correctness checking."""
    u = jnp.take(params["user_embedding"], user_ids, axis=0)
    i = jnp.take(params["item_embedding"], item_ids, axis=0)
    x = jnp.concatenate([u, i], axis=-1)
    h1 = jnp.maximum(x @ params["w1"].T + params["b1"], 0.0)
    h2 = jnp.maximum(h1 @ params["w2"].T + params["b2"], 0.0)
    return jnp.squeeze(jax.nn.sigmoid(h2 @ params["w3"].T + params["b3"]))


if __name__ == "__main__":
    key = jax.random.PRNGKey(0)
    num_users, num_items = 32, 48

    pkey, ukey, ikey = jax.random.split(key, 3)
    params = init_params(pkey, num_users, num_items)

    prepared_f32 = prepare_params(params, jnp.float32)     # exact-semantics path
    prepared_bf16 = prepare_params(params, jnp.bfloat16)   # default perf path

    fwd = jax.jit(neumf_forward, static_argnames="tb")

    # Small batch (padded up to a single 128-lane tile inside the wrapper).
    batch = 8
    user_ids = jax.random.randint(ukey, (batch,), 0, num_users, jnp.int32)
    item_ids = jax.random.randint(ikey, (batch,), 0, num_items, jnp.int32)
    ref = neumf_ref(params, user_ids, item_ids)

    out_f32 = jax.block_until_ready(fwd(prepared_f32, user_ids, item_ids))
    assert out_f32.shape == (batch,)
    assert jnp.allclose(out_f32, ref, atol=1e-5, rtol=1e-5), "f32 mismatch (batch=8)"

    out_bf16 = jax.block_until_ready(fwd(prepared_bf16, user_ids, item_ids))
    assert out_bf16.shape == (batch,)
    assert jnp.allclose(out_bf16, ref, atol=2e-2, rtol=2e-2), "bf16 mismatch (batch=8)"

    # Ragged batch exercising multiple grid steps + id-padding tail (grid = 3).
    batch2 = 300
    u2 = jax.random.randint(jax.random.PRNGKey(1), (batch2,), 0, num_users,
                            jnp.int32)
    i2 = jax.random.randint(jax.random.PRNGKey(2), (batch2,), 0, num_items,
                            jnp.int32)
    ref2 = neumf_ref(params, u2, i2)

    out2_f32 = jax.block_until_ready(fwd(prepared_f32, u2, i2, tb=128))
    assert out2_f32.shape == (batch2,)
    assert jnp.allclose(out2_f32, ref2, atol=1e-5, rtol=1e-5), "f32 mismatch (batch=300)"

    out2_bf16 = jax.block_until_ready(fwd(prepared_bf16, u2, i2))
    assert out2_bf16.shape == (batch2,)
    assert jnp.allclose(out2_bf16, ref2, atol=2e-2, rtol=2e-2), "bf16 mismatch (batch=300)"

    print("KERNEL_OK")
</pallas_src>

<mosaic_0001>
module attributes {stable_mosaic.version = 11 : i64} {
  func.func @neumf_mlp_kernel(%arg0: i32, %arg1: memref<16x128xf32, #tpu.memory_space<vmem>>, %arg2: memref<64x16xf32, #tpu.memory_space<vmem>>, %arg3: memref<32x64xf32, #tpu.memory_space<vmem>>, %arg4: memref<64x3xf32, #tpu.memory_space<vmem>>, %arg5: memref<1x128xf32, #tpu.memory_space<vmem>>) attributes {dimension_semantics = [#tpu.dimension_semantics<parallel>], iteration_bounds = array<i64: 1>, scalar_prefetch = 0 : i64, scratch_operands = 0 : i64, tpu.core_type = #tpu.core_type<tc>, window_params = [{transform_indices = @transform_0, window_bounds = array<i64: 16, 128>}, {pipeline_mode = #tpu.pipeline_mode<synchronous>, transform_indices = @transform_1, window_bounds = array<i64: 64, 16>}, {pipeline_mode = #tpu.pipeline_mode<synchronous>, transform_indices = @transform_2, window_bounds = array<i64: 32, 64>}, {pipeline_mode = #tpu.pipeline_mode<synchronous>, transform_indices = @transform_3, window_bounds = array<i64: 64, 3>}, {transform_indices = @transform_4, window_bounds = array<i64: 1, 128>}]} {
    %c0 = arith.constant 0 : index
    %c0_0 = arith.constant 0 : index
    %0 = vector.load %arg4[%c0, %c0_0] : memref<64x3xf32, #tpu.memory_space<vmem>>, vector<64x1xf32>
    %c0_1 = arith.constant 0 : index
    %c1 = arith.constant 1 : index
    %1 = vector.load %arg4[%c0_1, %c1] : memref<64x3xf32, #tpu.memory_space<vmem>>, vector<32x1xf32>
    %c32 = arith.constant 32 : index
    %c1_2 = arith.constant 1 : index
    %2 = vector.load %arg4[%c32, %c1_2] : memref<64x3xf32, #tpu.memory_space<vmem>>, vector<32x1xf32>
    %c0_3 = arith.constant 0 : index
    %c2 = arith.constant 2 : index
    %3 = vector.load %arg4[%c0_3, %c2] : memref<64x3xf32, #tpu.memory_space<vmem>>, vector<1x1xf32>
    %c0_4 = arith.constant 0 : index
    %c0_5 = arith.constant 0 : index
    %4 = vector.load %arg2[%c0_4, %c0_5] : memref<64x16xf32, #tpu.memory_space<vmem>>, vector<64x16xf32>
    %c0_6 = arith.constant 0 : index
    %c0_7 = arith.constant 0 : index
    %5 = vector.load %arg1[%c0_6, %c0_7] : memref<16x128xf32, #tpu.memory_space<vmem>>, vector<16x128xf32>
    %cst = arith.constant dense<0.000000e+00> : vector<64x128xf32>
    %6 = tpu.matmul %4, %5, %cst {dimension_numbers = #tpu.dot_dimension_numbers<[1], [0], [0], [1], [0, 0, 1, 1], [], []>} : vector<64x16xf32>, vector<16x128xf32>, vector<64x128xf32> -> vector<64x128xf32>
    %7 = vector.broadcast %0 : vector<64x1xf32> to vector<64x128xf32>
    %8 = arith.addf %6, %7 : vector<64x128xf32>
    %cst_8 = arith.constant 0.000000e+00 : f32
    %9 = vector.broadcast %cst_8 : f32 to vector<64x128xf32>
    %10 = arith.maximumf %8, %9 : vector<64x128xf32>
    %c0_9 = arith.constant 0 : index
    %c0_10 = arith.constant 0 : index
    %11 = vector.load %arg3[%c0_9, %c0_10] : memref<32x64xf32, #tpu.memory_space<vmem>>, vector<32x64xf32>
    %cst_11 = arith.constant dense<0.000000e+00> : vector<32x128xf32>
    %12 = tpu.matmul %11, %10, %cst_11 {dimension_numbers = #tpu.dot_dimension_numbers<[1], [0], [0], [1], [0, 0, 1, 1], [], []>} : vector<32x64xf32>, vector<64x128xf32>, vector<32x128xf32> -> vector<32x128xf32>
    %13 = vector.broadcast %1 : vector<32x1xf32> to vector<32x128xf32>
    %14 = arith.addf %12, %13 : vector<32x128xf32>
    %cst_12 = arith.constant 0.000000e+00 : f32
    %15 = vector.broadcast %cst_12 : f32 to vector<32x128xf32>
    %16 = arith.maximumf %14, %15 : vector<32x128xf32>
    %17 = vector.broadcast %2 : vector<32x1xf32> to vector<32x128xf32>
    %18 = arith.mulf %16, %17 : vector<32x128xf32>
    %cst_13 = arith.constant dense<0.000000e+00> : vector<128xf32>
    %19 = vector.multi_reduction <add>, %18, %cst_13 [0] : vector<32x128xf32> to vector<128xf32>
    %20 = vector.shape_cast %19 : vector<128xf32> to vector<1x128xf32>
    %21 = vector.broadcast %3 : vector<1x1xf32> to vector<1x128xf32>
    %22 = arith.addf %20, %21 : vector<1x128xf32>
    %23 = arith.negf %22 : vector<1x128xf32>
    %24 = math.exp %23 : vector<1x128xf32>
    %cst_14 = arith.constant 1.000000e+00 : f32
    %25 = vector.broadcast %cst_14 : f32 to vector<1x128xf32>
    %26 = arith.addf %25, %24 : vector<1x128xf32>
    %27 = arith.divf %25, %26 : vector<1x128xf32>
    %c0_15 = arith.constant 0 : index
    %c0_16 = arith.constant 0 : index
    %28 = vector.load %arg5[%c0_15, %c0_16] : memref<1x128xf32, #tpu.memory_space<vmem>>, vector<1x128xf32>
    tpu.vector_store %arg5[%c0_15, %c0_16], %27 {strides = array<i32>} : memref<1x128xf32, #tpu.memory_space<vmem>>, vector<1x128xf32>,
    return
  }
  func.func @transform_0(%arg0: i32) -> (i32, i32) {
    %c0_i32 = arith.constant 0 : i32
    %c0_i32_0 = arith.constant 0 : i32
    return %c0_i32, %arg0 : i32, i32
  }
  func.func @transform_1(%arg0: i32) -> (i32, i32) {
    %c0_i32 = arith.constant 0 : i32
    %c0_i32_0 = arith.constant 0 : i32
    %c0_i32_1 = arith.constant 0 : i32
    return %c0_i32, %c0_i32_0 : i32, i32
  }
  func.func @transform_2(%arg0: i32) -> (i32, i32) {
    %c0_i32 = arith.constant 0 : i32
    %c0_i32_0 = arith.constant 0 : i32
    %c0_i32_1 = arith.constant 0 : i32
    return %c0_i32, %c0_i32_0 : i32, i32
  }
  func.func @transform_3(%arg0: i32) -> (i32, i32) {
    %c0_i32 = arith.constant 0 : i32
    %c0_i32_0 = arith.constant 0 : i32
    %c0_i32_1 = arith.constant 0 : i32
    return %c0_i32, %c0_i32_0 : i32, i32
  }
  func.func @transform_4(%arg0: i32) -> (i32, i32) {
    %c0_i32 = arith.constant 0 : i32
    %c0_i32_0 = arith.constant 0 : i32
    return %c0_i32, %arg0 : i32, i32
  }
}

</mosaic_0001>

<llo_original>
// kernel: neumf_forward.1
$region0: #{neumf_forward.1}
  #allocation0 [shape = 'u32[]', space=smem, size = 0x4, offset = 0x4, fixed_abs, tag = 'smem constant byte address 0x4 - core index']
  #allocation1 [shape = 'u32[144,128]{1,0:T(1,128)}', space=vmem, size = 0x12000, scoped, tag = 'internal scratch']
  %s0 = inlined_call_operand.vmem [shape: f32[16,128], index: 0, kind: input, shape index: {}]
  %s1 = inlined_call_operand.vmem [shape: f32[64,16], index: 1, kind: input, shape index: {}]
  %s2 = inlined_call_operand.vmem [shape: f32[32,64], index: 2, kind: input, shape index: {}]
  %s3 = inlined_call_operand.vmem [shape: f32[64,3], index: 3, kind: input, shape index: {}]
  %s4 = inlined_call_operand.vmem [shape: f32[1,128], index: 4, kind: output, shape index: {}]
  %s5 = sld [smem:[#allocation0]]
  $region26: #{neumf_forward.1} parent=0
    _
  %s7 = ssub.s32 1, %s5
  %s8 = scalar_select 0, %s7, %s5
  // Predicated region
  $region2: #{neumf_forward.1} parent=0 // pred_check
    _
  $region3: #{neumf_forward.1} parent=0 // pred_check_branch
    %10 = sbr.rel (0) target = $region5
  $region4: #{neumf_forward.1} parent=0 // pred_region
    _
  $region5: #{neumf_forward.1} parent=0 // pred_fallthru
    _
  // Predicated region
  $region6: #{neumf_forward.1} parent=0 // pred_check
    _
  $region7: #{neumf_forward.1} parent=0 // pred_check_branch
    %12 = sbr.rel (0) target = $region9
  $region8: #{neumf_forward.1} parent=0 // pred_region
    _
  $region9: #{neumf_forward.1} parent=0 // pred_fallthru
    _
  // Predicated region
  $region10: #{neumf_forward.1} parent=0 // pred_check
    _
  $region11: #{neumf_forward.1} parent=0 // pred_check_branch
    %14 = sbr.rel (0) target = $region13
  $region12: #{neumf_forward.1} parent=0 // pred_region
    _
  $region13: #{neumf_forward.1} parent=0 // pred_fallthru
    _
  // Predicated region
  $region14: #{neumf_forward.1} parent=0 // pred_check
    _
  $region15: #{neumf_forward.1} parent=0 // pred_check_branch
    %16 = sbr.rel (0) target = $region17
  $region16: #{neumf_forward.1} parent=0 // pred_region
    _
  $region17: #{neumf_forward.1} parent=0 // pred_fallthru
    _
  %v17 = vld [vmem:[%s3] sm:$0xff]
  %v18 = vld [vmem:[%s3 + $0x8] sm:$0xff]
  %v19 = vld [vmem:[%s3 + $0x10] sm:$0xff]
  %v20 = vld [vmem:[%s3 + $0x18] sm:$0xff]
  %v21 = vld [vmem:[%s3 + $0x20] sm:$0xff]
  %v22 = vld [vmem:[%s3 + $0x28] sm:$0xff]
  %v23 = vld [vmem:[%s3 + $0x30] sm:$0xff]
  %v24 = vld [vmem:[%s3 + $0x38] sm:$0xff]
  %v25 = vld [vmem:[%s3] sm:$0x1]
  %v26 = vld [vmem:[%s1] sm:$0xff]
  %v27 = vld [vmem:[%s1 + $0x8] sm:$0xff]
  %v28 = vld [vmem:[%s1 + $0x10] sm:$0xff]
  %v29 = vld [vmem:[%s1 + $0x18] sm:$0xff]
  %v30 = vld [vmem:[%s1 + $0x20] sm:$0xff]
  %v31 = vld [vmem:[%s1 + $0x28] sm:$0xff]
  %v32 = vld [vmem:[%s1 + $0x30] sm:$0xff]
  %v33 = vld [vmem:[%s1 + $0x38] sm:$0xff]
  %v34 = vld [vmem:[%s0] sm:$0xff]
  %v35 = vld [vmem:[%s0 + $0x8] sm:$0xff]
  %37 = vset.pattern.permute.xlu0 0
  %38 = vperm.xlu0 %37, %v17
  %v39 = vpop.permute.xlu0 %38
  %42 = vset.pattern.permute.xlu0 0
  %43 = vperm.xlu0 %42, %v18
  %v44 = vpop.permute.xlu0 %43
  %47 = vset.pattern.permute.xlu0 0
  %48 = vperm.xlu0 %47, %v19
  %v49 = vpop.permute.xlu0 %48
  %52 = vset.pattern.permute.xlu0 0
  %53 = vperm.xlu0 %52, %v20
  %v54 = vpop.permute.xlu0 %53
  %57 = vset.pattern.permute.xlu0 0
  %58 = vperm.xlu0 %57, %v21
  %v59 = vpop.permute.xlu0 %58
  %62 = vset.pattern.permute.xlu0 0
  %63 = vperm.xlu0 %62, %v22
  %v64 = vpop.permute.xlu0 %63
  %67 = vset.pattern.permute.xlu0 0
  %68 = vperm.xlu0 %67, %v23
  %v69 = vpop.permute.xlu0 %68
  %72 = vset.pattern.permute.xlu0 0
  %73 = vperm.xlu0 %72, %v24
  %v74 = vpop.permute.xlu0 %73
  %vm76 = vcmask 130048
  %v78 = vsel %vm76, %v26, 0
  %v81 = vsel %vm76, %v27, 0
  %v84 = vsel %vm76, %v28, 0
  %v87 = vsel %vm76, %v29, 0
  %v90 = vsel %vm76, %v30, 0
  %v93 = vsel %vm76, %v31, 0
  %v96 = vsel %vm76, %v32, 0
  %v99 = vsel %vm76, %v33, 0
  %101 = vmatprep.subr.mxu0 0.0
  %102 = vmatpush1.msra.mxu0 %v34
  %103 = vmatprep.subr.mxu0 0.0
  %104 = vmatpush1.msra.mxu0 %v35
  %105 = vmatprep.subr.mxu0 0.0
  %106 = vmatpush1.msra.mxu0 0.0
  %107 = vmatprep.subr.mxu0 0.0
  %108 = vmatpush1.msra.mxu0 0.0
  %109 = vmatprep.subr.mxu0 0.0
  %110 = vmatpush1.msra.mxu0 0.0
  %111 = vmatprep.subr.mxu0 0.0
  %112 = vmatpush1.msra.mxu0 0.0
  %113 = vmatprep.subr.mxu0 0.0
  %114 = vmatpush1.msra.mxu0 0.0
  %115 = vmatprep.subr.mxu0 0.0
  %116 = vmatpush1.msra.mxu0 0.0
  %117 = vmatprep.subr.mxu0 0.0
  %118 = vmatpush1.msra.mxu0 0.0
  %119 = vmatprep.subr.mxu0 0.0
  %120 = vmatpush1.msra.mxu0 0.0
  %121 = vmatprep.subr.mxu0 0.0
  %122 = vmatpush1.msra.mxu0 0.0
  %123 = vmatprep.subr.mxu0 0.0
  %124 = vmatpush1.msra.mxu0 0.0
  %125 = vmatprep.subr.mxu0 0.0
  %126 = vmatpush1.msra.mxu0 0.0
  %127 = vmatprep.subr.mxu0 0.0
  %128 = vmatpush1.msra.mxu0 0.0
  %129 = vmatprep.subr.mxu0 0.0
  %130 = vmatpush1.msra.mxu0 0.0
  %131 = vmatprep.subr.mxu0 0.0
  %132 = vmatpush1.msra.mxu0 0.0
  %133 = vmatprep.subr.mxu0 0.0
  %134 = vmatpush1.msra.mxu0 0.0
  %135 = vmatprep.subr.mxu0 0.0
  %136 = vmatpush1.msra.mxu0 0.0
  %137 = vmatprep.subr.mxu0 0.0
  %138 = vmatpush1.msra.mxu0 0.0
  %139 = vmatprep.subr.mxu0 0.0
  %140 = vmatpush1.msra.mxu0 0.0
  %141 = vmatprep.subr.mxu0 0.0
  %142 = vmatpush1.msra.mxu0 0.0
  %143 = vmatprep.subr.mxu0 0.0
  %144 = vmatpush1.msra.mxu0 0.0
  %145 = vmatprep.subr.mxu0 0.0
  %146 = vmatpush1.msra.mxu0 0.0
  %147 = vmatprep.subr.mxu0 0.0
  %148 = vmatpush1.msra.mxu0 0.0
  %149 = vmatprep.subr.mxu0 0.0
  %150 = vmatpush1.msra.mxu0 0.0
  %151 = vmatprep.subr.mxu0 0.0
  %152 = vmatpush1.msra.mxu0 0.0
  %153 = vmatprep.subr.mxu0 0.0
  %154 = vmatpush1.msra.mxu0 0.0
  %155 = vmatprep.subr.mxu0 0.0
  %156 = vmatpush1.msra.mxu0 0.0
  %157 = vmatprep.subr.mxu0 0.0
  %158 = vmatpush1.msra.mxu0 0.0
  %159 = vmatprep.subr.mxu0 0.0
  %160 = vmatpush1.msra.mxu0 0.0
  %161 = vmatprep.subr.mxu0 0.0
  %162 = vmatpush1.msra.mxu0 0.0
  %163 = vmatprep.subr.mxu0 0.0
  %164 = vmatpush1.msra.mxu0 0.0
  %165 = vmatprep.mubr.f32.mxu0 0.0
  %166 = vmatmul.mubr.f32.gmra.mrb[0].mxu0 %v78
  %v167 = vpop.f32.mrb[0].mxu0
  %v168 = vadd.f32 %v39, %v167
  %v169 = vpop.f32.mrb[0].mxu0
  %170 = vmatprep.mubr.f32.mxu0 0.0
  %171 = vmatmul.mubr.f32.gmra.mrb[0].mxu0 %v81
  %v172 = vpop.f32.mrb[0].mxu0
  %v173 = vadd.f32 %v44, %v172
  %v174 = vpop.f32.mrb[0].mxu0
  %175 = vmatprep.mubr.f32.mxu0 0.0
  %176 = vmatmul.mubr.f32.gmra.mrb[0].mxu0 %v84
  %v177 = vpop.f32.mrb[0].mxu0
  %v178 = vadd.f32 %v49, %v177
  %v179 = vpop.f32.mrb[0].mxu0
  %180 = vmatprep.mubr.f32.mxu0 0.0
  %181 = vmatmul.mubr.f32.gmra.mrb[0].mxu0 %v87
  %v182 = vpop.f32.mrb[0].mxu0
  %v183 = vadd.f32 %v54, %v182
  %v184 = vpop.f32.mrb[0].mxu0
  %185 = vmatprep.mubr.f32.mxu0 0.0
  %186 = vmatmul.mubr.f32.gmra.mrb[0].mxu0 %v90
  %v187 = vpop.f32.mrb[0].mxu0
  %v188 = vadd.f32 %v59, %v187
  %v189 = vpop.f32.mrb[0].mxu0
  %190 = vmatprep.mubr.f32.mxu0 0.0
  %191 = vmatmul.mubr.f32.gmra.mrb[0].mxu0 %v93
  %v192 = vpop.f32.mrb[0].mxu0
  %v193 = vadd.f32 %v64, %v192
  %v194 = vpop.f32.mrb[0].mxu0
  %195 = vmatprep.mubr.f32.mxu0 0.0
  %196 = vmatmul.mubr.f32.gmra.mrb[0].mxu0 %v96
  %v197 = vpop.f32.mrb[0].mxu0
  %v198 = vadd.f32 %v69, %v197
  %v199 = vpop.f32.mrb[0].mxu0
  %200 = vmatprep.mubr.f32.mxu0 0.0
  %201 = vmatmul.mubr.f32.gmra.mrb[0].mxu0 %v99
  %v202 = vpop.f32.mrb[0].mxu0
  %v203 = vadd.f32 %v74, %v202
  %v204 = vpop.f32.mrb[0].mxu0
  %205 = vdwg.mxu0
  %v206 = vmax.f32 %v168, 0.0
  %v207 = vmax.f32 %v173, 0.0
  %v208 = vmax.f32 %v178, 0.0
  %v209 = vmax.f32 %v183, 0.0
  %v210 = vmax.f32 %v188, 0.0
  %v211 = vmax.f32 %v193, 0.0
  %v212 = vmax.f32 %v198, 0.0
  %v213 = vmax.f32 %v203, 0.0
  %v214 = vld [vmem:[%s2] sm:$0xff]
  %v215 = vld [vmem:[%s2 + $0x8] sm:$0xff]
  %v216 = vld [vmem:[%s2 + $0x10] sm:$0xff]
  %v217 = vld [vmem:[%s2 + $0x18] sm:$0xff]
  %218 = vset.pattern.permute.xlu0 1
  %219 = vperm.xlu0 %218, %v17
  %v220 = vpop.permute.xlu0 %219
  %222 = vset.pattern.permute.xlu0 1
  %223 = vperm.xlu0 %222, %v18
  %v224 = vpop.permute.xlu0 %223
  %226 = vset.pattern.permute.xlu0 1
  %227 = vperm.xlu0 %226, %v19
  %v228 = vpop.permute.xlu0 %227
  %230 = vset.pattern.permute.xlu0 1
  %231 = vperm.xlu0 %230, %v20
  %v232 = vpop.permute.xlu0 %231
  %vm234 = vcmask 523264
  %v236 = vsel %vm234, %v214, 0
  %v239 = vsel %vm234, %v215, 0
  %v242 = vsel %vm234, %v216, 0
  %v245 = vsel %vm234, %v217, 0
  %247 = vmatprep.subr.mxu0 0.0
  %248 = vmatpush1.msra.mxu0 %v206
  %249 = vmatprep.subr.mxu0 0.0
  %250 = vmatpush1.msra.mxu0 %v207
  %251 = vmatprep.subr.mxu0 0.0
  %252 = vmatpush1.msra.mxu0 %v208
  %253 = vmatprep.subr.mxu0 0.0
  %254 = vmatpush1.msra.mxu0 %v209
  %255 = vmatprep.subr.mxu0 0.0
  %256 = vmatpush1.msra.mxu0 %v210
  %257 = vmatprep.subr.mxu0 0.0
  %258 = vmatpush1.msra.mxu0 %v211
  %259 = vmatprep.subr.mxu0 0.0
  %260 = vmatpush1.msra.mxu0 %v212
  %261 = vmatprep.subr.mxu0 0.0
  %262 = vmatpush1.msra.mxu0 %v213
  %263 = vmatprep.subr.mxu0 0.0
  %264 = vmatpush1.msra.mxu0 0.0
  %265 = vmatprep.subr.mxu0 0.0
  %266 = vmatpush1.msra.mxu0 0.0
  %267 = vmatprep.subr.mxu0 0.0
  %268 = vmatpush1.msra.mxu0 0.0
  %269 = vmatprep.subr.mxu0 0.0
  %270 = vmatpush1.msra.mxu0 0.0
  %271 = vmatprep.subr.mxu0 0.0
  %272 = vmatpush1.msra.mxu0 0.0
  %273 = vmatprep.subr.mxu0 0.0
  %274 = vmatpush1.msra.mxu0 0.0
  %275 = vmatprep.subr.mxu0 0.0
  %276 = vmatpush1.msra.mxu0 0.0
  %277 = vmatprep.subr.mxu0 0.0
  %278 = vmatpush1.msra.mxu0 0.0
  %279 = vmatprep.subr.mxu0 0.0
  %280 = vmatpush1.msra.mxu0 0.0
  %281 = vmatprep.subr.mxu0 0.0
  %282 = vmatpush1.msra.mxu0 0.0
  %283 = vmatprep.subr.mxu0 0.0
  %284 = vmatpush1.msra.mxu0 0.0
  %285 = vmatprep.subr.mxu0 0.0
  %286 = vmatpush1.msra.mxu0 0.0
  %287 = vmatprep.subr.mxu0 0.0
  %288 = vmatpush1.msra.mxu0 0.0
  %289 = vmatprep.subr.mxu0 0.0
  %290 = vmatpush1.msra.mxu0 0.0
  %291 = vmatprep.subr.mxu0 0.0
  %292 = vmatpush1.msra.mxu0 0.0
  %293 = vmatprep.subr.mxu0 0.0
  %294 = vmatpush1.msra.mxu0 0.0
  %295 = vmatprep.subr.mxu0 0.0
  %296 = vmatpush1.msra.mxu0 0.0
  %297 = vmatprep.subr.mxu0 0.0
  %298 = vmatpush1.msra.mxu0 0.0
  %299 = vmatprep.subr.mxu0 0.0
  %300 = vmatpush1.msra.mxu0 0.0
  %301 = vmatprep.subr.mxu0 0.0
  %302 = vmatpush1.msra.mxu0 0.0
  %303 = vmatprep.subr.mxu0 0.0
  %304 = vmatpush1.msra.mxu0 0.0
  %305 = vmatprep.subr.mxu0 0.0
  %306 = vmatpush1.msra.mxu0 0.0
  %307 = vmatprep.subr.mxu0 0.0
  %308 = vmatpush1.msra.mxu0 0.0
  %309 = vmatprep.subr.mxu0 0.0
  %310 = vmatpush1.msra.mxu0 0.0
  %311 = vmatprep.mubr.f32.mxu0 0.0
  %312 = vmatmul.mubr.f32.gmra.mrb[0].mxu0 %v236
  %v313 = vpop.f32.mrb[0].mxu0
  %v314 = vadd.f32 %v220, %v313
  %v315 = vpop.f32.mrb[0].mxu0
  %316 = vmatprep.mubr.f32.mxu0 0.0
  %317 = vmatmul.mubr.f32.gmra.mrb[0].mxu0 %v239
  %v318 = vpop.f32.mrb[0].mxu0
  %v319 = vadd.f32 %v224, %v318
  %v320 = vpop.f32.mrb[0].mxu0
  %321 = vmatprep.mubr.f32.mxu0 0.0
  %322 = vmatmul.mubr.f32.gmra.mrb[0].mxu0 %v242
  %v323 = vpop.f32.mrb[0].mxu0
  %v324 = vadd.f32 %v228, %v323
  %v325 = vpop.f32.mrb[0].mxu0
  %326 = vmatprep.mubr.f32.mxu0 0.0
  %327 = vmatmul.mubr.f32.gmra.mrb[0].mxu0 %v245
  %v328 = vpop.f32.mrb[0].mxu0
  %v329 = vadd.f32 %v232, %v328
  %v330 = vpop.f32.mrb[0].mxu0
  %331 = vdwg.mxu0
  %v332 = vmax.f32 %v314, 0.0
  %v333 = vmax.f32 %v319, 0.0
  %v334 = vmax.f32 %v324, 0.0
  %v335 = vmax.f32 %v329, 0.0
  %336 = vset.pattern.permute.xlu0 1
  %337 = vperm.xlu0 %336, %v21
  %v338 = vpop.permute.xlu0 %337
  %340 = vset.pattern.permute.xlu0 1
  %341 = vperm.xlu0 %340, %v22
  %v342 = vpop.permute.xlu0 %341
  %344 = vset.pattern.permute.xlu0 1
  %345 = vperm.xlu0 %344, %v23
  %v346 = vpop.permute.xlu0 %345
  %348 = vset.pattern.permute.xlu0 1
  %349 = vperm.xlu0 %348, %v24
  %v350 = vpop.permute.xlu0 %349
  %v352 = vmul.f32 %v332, %v338
  %v353 = vmul.f32 %v333, %v342
  %v354 = vmul.f32 %v334, %v346
  %v355 = vmul.f32 %v335, %v350
  %v356 = vadd.f32 %v352, %v353
  %v357 = vadd.f32 %v356, %v354
  %v358 = vadd.f32 %v357, %v355
  %v359 = vrot.slane %v358, 4
  %v360 = vadd.f32 %v358, %v359
  %v361 = vrot.slane %v360, 2
  %v362 = vadd.f32 %v360, %v361
  %v363 = vrot.slane %v362, 1
  %v364 = vadd.f32 %v362, %v363
  %366 = vset.pattern.permute.xlu0 2
  %367 = vperm.xlu0 %366, %v25
  %v368 = vpop.permute.xlu0 %367
  %v370 = vadd.f32 %v364, %v368
  %v371 = vxor.u32 %v370, 2147483648
  %v372 = vmul.f32 %v371, 1.442695
  %v373 = vpow.pop %v372
  %v374 = vadd.f32 %v373, 1.0
  %v375 = vrcp.pop %v374
  %v376 = vmul.f32 1.0, %v375
  %377 = vst [vmem:[%s4] sm:$0x1] %v376
  // Predicated region
  $region18: #{neumf_forward.1} parent=0 // pred_check
    _
  $region19: #{neumf_forward.1} parent=0 // pred_check_branch
    %379 = sbr.rel (0) target = $region21
  $region20: #{neumf_forward.1} parent=0 // pred_region
    _
  $region21: #{neumf_forward.1} parent=0 // pred_fallthru
    _
  // Predicated region
  $region22: #{neumf_forward.1} parent=0 // pred_check
    _
  $region23: #{neumf_forward.1} parent=0 // pred_check_branch
    %381 = sbr.rel (0) target = $region25
  $region24: #{neumf_forward.1} parent=0 // pred_region
    _
  $region25: #{neumf_forward.1} parent=0 // pred_fallthru
    _

</llo_original>
